<compile_context>
chip_gen: v5e
topology: v5e:2x2
jax: 0.10.0
libtpu: 0.0.40
codegen_flags: <defaults>
</compile_context>

<pallas_src>
import jax
import jax.numpy as jnp
from jax import lax
from jax.experimental import pallas as pl
from jax.experimental.pallas import tpu as pltpu


def _round_up(n: int, m: int) -> int:
    return (n + m - 1) // m * m


def _classifier_kernel(x_ref, w_ref, b_ref, o_ref, acc_ref):
    """One (tm, tn) output tile; grid axis 2 walks the K (feature) reduction."""
    k = pl.program_id(2)

    @pl.when(k == 0)
    def _init():
        acc_ref[...] = jnp.zeros_like(acc_ref)

    # x_ref: [tm, tk], w_ref: [tn, tk] (PyTorch [C, D] layout -> contract the
    # last dim of both operands).  bf16 operands, f32 accumulation on the MXU.
    acc_ref[...] += lax.dot_general(
        x_ref[...], w_ref[...],
        dimension_numbers=(((1,), (1,)), ((), ())),
        preferred_element_type=jnp.float32,
    )

    @pl.when(k == pl.num_programs(2) - 1)
    def _finalize():
        # Bias added exactly once, in f32, on the final K step (single store).
        o_ref[...] = (acc_ref[...] + b_ref[...]).astype(o_ref.dtype)


def prepare_classifier_params(weight, bias, *, compute_dtype=jnp.bfloat16):
    """One-time (parameter-load-time) prep: pad C/D to multiples of 128, cast weight.

    weight: [C, D] (PyTorch nn.Linear layout, kept -- no transpose).
    bias:   [C].
    Returns (w_prepped [C_pad, D_pad] compute_dtype, b_prepped [1, C_pad] f32).
    """
    C, D = weight.shape
    C_pad = _round_up(C, 128)
    D_pad = _round_up(D, 128)
    w = weight
    if (C_pad, D_pad) != (C, D):
        w = jnp.pad(w, ((0, C_pad - C), (0, D_pad - D)))
    w = w.astype(compute_dtype)
    b = bias.astype(jnp.float32)
    if C_pad != C:
        b = jnp.pad(b, (0, C_pad - C))
    return w, b.reshape(1, C_pad)


def classifier_forward(x, w_prepped, b_prepped, num_classes):
    """x: [B, D]; params from prepare_classifier_params. Returns [B, num_classes] f32."""
    B, D = x.shape
    C_pad, D_pad = w_prepped.shape
    assert b_prepped.shape == (1, C_pad)
    assert D <= D_pad

    # Tile sizes: multiples of (8, 128); small enough for v7x 64 MiB VMEM,
    # 128/256-granular which also suits v5e's 4x128x128 MXU.
    tm = min(256, _round_up(B, 8))
    tn = 256 if C_pad % 256 == 0 else 128
    tk = 256 if D_pad % 256 == 0 else 128
    B_pad = _round_up(B, tm)

    x_p = x
    if (B_pad, D_pad) != (B, D):
        x_p = jnp.pad(x_p, ((0, B_pad - B), (0, D_pad - D)))
    x_p = x_p.astype(w_prepped.dtype)   # keep bf16 operands (no info lost: x arrives bf16)

    grid = (B_pad // tm, C_pad // tn, D_pad // tk)

    compute_bytes = jnp.dtype(w_prepped.dtype).itemsize
    cost = pl.CostEstimate(
        flops=2 * B_pad * D_pad * C_pad,
        bytes_accessed=(B_pad * D_pad + C_pad * D_pad) * compute_bytes
        + B_pad * C_pad * 4 + C_pad * 4,
        transcendentals=0,
    )

    out_p = pl.pallas_call(
        _classifier_kernel,
        out_shape=jax.ShapeDtypeStruct((B_pad, C_pad), jnp.float32),
        grid=grid,
        in_specs=[
            pl.BlockSpec((tm, tk), lambda i, j, k: (i, k)),   # x tile
            pl.BlockSpec((tn, tk), lambda i, j, k: (j, k)),   # weight tile ([C, D] layout)
            pl.BlockSpec((1, tn), lambda i, j, k: (0, j)),    # bias, resident across k
        ],
        out_specs=pl.BlockSpec((tm, tn), lambda i, j, k: (i, j)),
        scratch_shapes=[pltpu.VMEM((tm, tn), jnp.float32)],
        compiler_params=pltpu.CompilerParams(
            dimension_semantics=("parallel", "parallel", "arbitrary"),
            vmem_limit_bytes=32 * 1024 * 1024,
        ),
        cost_estimate=cost,
    )(x_p, w_prepped, b_prepped)

    return out_p[:B, :num_classes]


if __name__ == "__main__":
    # Small but non-trivial shapes: exercises the K reduction (512/256 = 2 steps)
    # and the lane-dense class padding (1000 -> 1024, sliced off afterwards).
    B, D, C = 128, 512, 1000

    key = jax.random.PRNGKey(0)
    kx, kw, kb = jax.random.split(key, 3)

    # nn.Linear-shaped params: weight [C, D], bias [C] (f32, PyTorch layout).
    bound = 1.0 / (D ** 0.5)
    weight = jax.random.uniform(kw, (C, D), minval=-bound, maxval=bound, dtype=jnp.float32)
    bias = jax.random.uniform(kb, (C,), minval=-bound, maxval=bound, dtype=jnp.float32)
    x = jax.random.normal(kx, (B, D), dtype=jnp.bfloat16)   # backbone feature, bf16

    # Parameter prep (pad + bf16 cast) happens once, outside the per-step hot path.
    w_p, b_p = prepare_classifier_params(weight, bias, compute_dtype=jnp.bfloat16)

    out = classifier_forward(x, w_p, b_p, num_classes=C)
    out = jax.block_until_ready(out)

    # Reference: exact f32 semantics of the PyTorch module (x.float() @ W.T + b).
    # Tolerance is loosened slightly because the kernel feeds the MXU bf16
    # operands (with f32 accumulation); pass compute_dtype=jnp.float32 to
    # prepare_classifier_params for accuracy-critical heads.
    ref = x.astype(jnp.float32) @ weight.T + bias
    assert out.shape == (B, C)
    assert jnp.allclose(out, ref, atol=5e-2, rtol=5e-2), float(jnp.max(jnp.abs(out - ref)))

    print("KERNEL_OK")
</pallas_src>

<mosaic_0001>
module attributes {stable_mosaic.version = 11 : i64} {
  func.func @_classifier_kernel(%arg0: i32, %arg1: i32, %arg2: i32, %arg3: memref<128x256xbf16, #tpu.memory_space<vmem>>, %arg4: memref<256x256xbf16, #tpu.memory_space<vmem>>, %arg5: memref<1x256xf32, #tpu.memory_space<vmem>>, %arg6: memref<128x256xf32, #tpu.memory_space<vmem>>, %arg7: memref<128x256xf32, #tpu.memory_space<vmem>>) attributes {dimension_semantics = [#tpu.dimension_semantics<parallel>, #tpu.dimension_semantics<parallel>, #tpu.dimension_semantics<arbitrary>], iteration_bounds = array<i64: 1, 4, 2>, scalar_prefetch = 0 : i64, scratch_operands = 1 : i64, tpu.core_type = #tpu.core_type<tc>, window_params = [{transform_indices = @transform_0, window_bounds = array<i64: 128, 256>}, {transform_indices = @transform_1, window_bounds = array<i64: 256, 256>}, {transform_indices = @transform_2, window_bounds = array<i64: 1, 256>}, {transform_indices = @transform_3, window_bounds = array<i64: 128, 256>}]} {
    %c0_i32 = arith.constant 0 : i32
    %0 = arith.cmpi eq, %arg2, %c0_i32 : i32
    %1 = arith.extui %0 : i1 to i32
    %c0_i32_0 = arith.constant 0 : i32
    %2 = arith.cmpi ne, %1, %c0_i32_0 : i32
    scf.if %2 {
      %cst_9 = arith.constant 0.000000e+00 : f32
      %12 = vector.broadcast %cst_9 : f32 to vector<128x256xf32>
      %c0_10 = arith.constant 0 : index
      %c0_11 = arith.constant 0 : index
      %13 = vector.load %arg7[%c0_10, %c0_11] : memref<128x256xf32, #tpu.memory_space<vmem>>, vector<128x256xf32>
      tpu.vector_store %arg7[%c0_10, %c0_11], %12 {strides = array<i32>} : memref<128x256xf32, #tpu.memory_space<vmem>>, vector<128x256xf32>,
    } else {
    }
    %c0 = arith.constant 0 : index
    %c0_1 = arith.constant 0 : index
    %3 = vector.load %arg7[%c0, %c0_1] : memref<128x256xf32, #tpu.memory_space<vmem>>, vector<128x256xf32>
    %c0_2 = arith.constant 0 : index
    %c0_3 = arith.constant 0 : index
    %4 = vector.load %arg3[%c0_2, %c0_3] : memref<128x256xbf16, #tpu.memory_space<vmem>>, vector<128x256xbf16>
    %c0_4 = arith.constant 0 : index
    %c0_5 = arith.constant 0 : index
    %5 = vector.load %arg4[%c0_4, %c0_5] : memref<256x256xbf16, #tpu.memory_space<vmem>>, vector<256x256xbf16>
    %cst = arith.constant dense<0.000000e+00> : vector<128x256xf32>
    %6 = tpu.matmul %4, %5, %cst {dimension_numbers = #tpu.dot_dimension_numbers<[1], [1], [0], [0], [0, 0, 1, 0], [], []>} : vector<128x256xbf16>, vector<256x256xbf16>, vector<128x256xf32> -> vector<128x256xf32>
    %7 = arith.addf %3, %6 : vector<128x256xf32>
    %c0_6 = arith.constant 0 : index
    %c0_7 = arith.constant 0 : index
    %8 = vector.load %arg7[%c0_6, %c0_7] : memref<128x256xf32, #tpu.memory_space<vmem>>, vector<128x256xf32>
    tpu.vector_store %arg7[%c0_6, %c0_7], %7 {strides = array<i32>} : memref<128x256xf32, #tpu.memory_space<vmem>>, vector<128x256xf32>,
    %c1_i32 = arith.constant 1 : i32
    %9 = arith.cmpi eq, %arg2, %c1_i32 : i32
    %10 = arith.extui %9 : i1 to i32
    %c0_i32_8 = arith.constant 0 : i32
    %11 = arith.cmpi ne, %10, %c0_i32_8 : i32
    scf.if %11 {
      %c0_9 = arith.constant 0 : index
      %c0_10 = arith.constant 0 : index
      %12 = vector.load %arg7[%c0_9, %c0_10] : memref<128x256xf32, #tpu.memory_space<vmem>>, vector<128x256xf32>
      %c0_11 = arith.constant 0 : index
      %c0_12 = arith.constant 0 : index
      %13 = vector.load %arg5[%c0_11, %c0_12] : memref<1x256xf32, #tpu.memory_space<vmem>>, vector<1x256xf32>
      %14 = vector.broadcast %13 : vector<1x256xf32> to vector<128x256xf32>
      %15 = arith.addf %12, %14 : vector<128x256xf32>
      %c0_13 = arith.constant 0 : index
      %c0_14 = arith.constant 0 : index
      %16 = vector.load %arg6[%c0_13, %c0_14] : memref<128x256xf32, #tpu.memory_space<vmem>>, vector<128x256xf32>
      tpu.vector_store %arg6[%c0_13, %c0_14], %15 {strides = array<i32>} : memref<128x256xf32, #tpu.memory_space<vmem>>, vector<128x256xf32>,
    } else {
    }
    return
  }
  func.func @transform_0(%arg0: i32, %arg1: i32, %arg2: i32) -> (i32, i32) {
    %c0_i32 = arith.constant 0 : i32
    return %arg0, %arg2 : i32, i32
  }
  func.func @transform_1(%arg0: i32, %arg1: i32, %arg2: i32) -> (i32, i32) {
    %c0_i32 = arith.constant 0 : i32
    return %arg1, %arg2 : i32, i32
  }
  func.func @transform_2(%arg0: i32, %arg1: i32, %arg2: i32) -> (i32, i32) {
    %c0_i32 = arith.constant 0 : i32
    %c0_i32_0 = arith.constant 0 : i32
    return %c0_i32, %arg1 : i32, i32
  }
  func.func @transform_3(%arg0: i32, %arg1: i32, %arg2: i32) -> (i32, i32) {
    %c0_i32 = arith.constant 0 : i32
    return %arg0, %arg1 : i32, i32
  }
}

</mosaic_0001>

<llo_original>
// kernel: tpu_custom_call.1
$region0: #{tpu_custom_call.1}
  #allocation0 [shape = 'u32[]', space=smem, size = 0x4, offset = 0x4, fixed_abs, tag = 'smem constant byte address 0x4 - core index']
  #allocation1 [shape = 'u32[72,128]{1,0:T(1,128)}', space=vmem, size = 0x9000, scoped, tag = 'internal scratch']
  #allocation2 [shape = 'f32[128,256]{1,0:T(8,128)}', space=vmem, size = 0x20000, scoped, tag = 'scratch operand']
  %s0 = inlined_call_operand.hbm [shape: bf16[128,512], index: 0, kind: input, shape index: {}]
  %s1 = inlined_call_operand.hbm [shape: bf16[1024,512], index: 1, kind: input, shape index: {}]
  %s2 = inlined_call_operand.hbm [shape: f32[1,1024], index: 2, kind: input, shape index: {}]
  %s3 = inlined_call_operand.hbm [shape: f32[128,1024], index: 3, kind: output, shape index: {}]
  %s4 = sld [smem:[#allocation0]]
  $region65: #{tpu_custom_call.1} parent=0
    _
  %s6 = ssub.s32 1, %s4
  %s7 = scalar_select 0, %s6, %s4
  $region1: #{tpu_custom_call.1} parent=0
    #allocation3 [shape = 'u8[131072]{0}', space=vmem, size = 0x20000, scoped, tag = 'input window, operand 0']
    #allocation4 [shape = 's32[2]{0}', space=sflag, size = 0x8, scoped, tag = 'scoped memory for tpu_custom_call.1']
    #allocation5 [shape = 's32[2]{0}', space=sflag, size = 0x8, scoped, tag = 'scoped memory for tpu_custom_call.1']
    #allocation6 [shape = 'u8[262144]{0}', space=vmem, size = 0x40000, scoped, tag = 'input window, operand 1']
    #allocation7 [shape = 's32[2]{0}', space=sflag, size = 0x8, scoped, tag = 'scoped memory for tpu_custom_call.1']
    #allocation8 [shape = 'u8[2048]{0}', space=vmem, size = 0x800, scoped, tag = 'input window, operand 2']
    #allocation9 [shape = 'u8[262144]{0}', space=vmem, size = 0x40000, scoped, tag = 'output window, operand 0']
    %8 = vsyncpa [#allocation4], 0
    %s9 = scalar_lea.sflag [#allocation4], 1
    %10 = vsyncpa %s9, 0
    %11 = vsyncpa [#allocation7], 0
    %s12 = scalar_lea.sflag [#allocation7], 1
    %13 = vsyncpa %s12, 0
    %14 = vsyncpa [#allocation5], 0
    %s15 = scalar_lea.sflag [#allocation5], 1
    %16 = vsyncpa %s15, 0
    loop: start=0, step=1, limit=10
    $region2: #{tpu_custom_call.1} parent=1 // loop_pre_header
      _
    $region3: #{tpu_custom_call.1} parent=1 // loop_header
      %s18 = sphi 0, %s22
      %p19 = scmp.ge.s32.totalorder %s18, 10
      %s25 = sphi 0, %s44
      %s26 = sphi 0, %s40
      %s27 = sphi 0, %s36
      %s28 = sphi 0, %s25
      %s29 = sphi 0, %s26
      %s30 = sphi 0, %s27
      %s31 = sphi 0, %s28
      %s32 = sphi 0, %s29
      %s33 = sphi 0, %s30
      %s49 = sphi 0, %s51
      %s52 = sphi 0, %s49
      %s53 = sphi 0, %s52
      %s69 = sphi 0, %s53
      %s77 = sphi 0, %s79
      %s80 = sphi 0, %s77
      %s81 = sphi 0, %s80
      %s97 = sphi 0, %s81
      %s103 = sphi 0, %s105
      %s106 = sphi 0, %s103
      %s107 = sphi 0, %s106
      %s123 = sphi 0, %s107
      %s131 = sphi 0, %s133
      %s134 = sphi 0, %s131
      %s135 = sphi 0, %s134
      %s151 = sphi 0, %s135
    $region4: #{tpu_custom_call.1} parent=1 // loop_header_branch
      %21 = sbr.rel (%p19) target = $region8
    $region5: #{tpu_custom_call.1} parent=1 // loop_body
      %s23 = ssub.s32 %s18, 1
      %s24 = ssub.s32 %s18, 2
      %s34 = sadd.s32 1, %s27
      %p35 = scmp.ge.s32.totalorder %s34, 2
      %s36 = scalar_select %p35, 0, %s34
      %s37 = sadd.s32 1, %s26
      %s38 = scalar_select %p35, %s37, %s26
      %p39 = scmp.ge.s32.totalorder %s38, 4
      %s40 = scalar_select %p39, 0, %s38
      %s41 = sadd.s32 1, %s25
      %s42 = scalar_select %p39, %s41, %s25
      %p43 = scmp.ge.s32.totalorder %s42, 1
      %s44 = scalar_select %p43, 0, %s42
      %s45 = ssub.s32 %s25, %s44
      %s46 = ssub.s32 %s27, %s36
      %s47 = sor.u32 %s45, %s46
      %p48 = scmp.eq.s32.totalorder %s47, 0
      %s50 = sadd.s32 %s49, 1
      %s51 = scalar_select %p48, %s49, %s50
      %p54 = pneg %p48
      %p55 = scmp.eq.s32.totalorder %s18, 7
      %p56 = por %p54, %p55
      %p57 = scmp.ne.s32.totalorder %s49, %s52
      %p58 = scmp.eq.s32.totalorder %s18, 0
      %p59 = por %p57, %p58
      %p60 = scmp.ne.s32.totalorder %s49, %s52
      %p61 = scmp.eq.s32.totalorder %s23, 7
      %p62 = por %p60, %p61
      %p63 = scmp.ne.s32.totalorder %s52, %s53
      %p64 = scmp.eq.s32.totalorder %s23, 0
      %p65 = por %p63, %p64
      %p66 = scmp.ne.s32.totalorder %s52, %s53
      %p67 = scmp.eq.s32.totalorder %s24, 7
      %p68 = por %p66, %p67
      %p70 = scmp.ne.s32.totalorder %s53, %s69
      %p71 = scmp.eq.s32.totalorder %s24, 0
      %p72 = por %p70, %p71
      %s73 = ssub.s32 %s26, %s40
      %s74 = ssub.s32 %s27, %s36
      %s75 = sor.u32 %s73, %s74
      %p76 = scmp.eq.s32.totalorder %s75, 0
      %s78 = sadd.s32 %s77, 1
      %s79 = scalar_select %p76, %s77, %s78
      %p82 = pneg %p76
      %p83 = scmp.eq.s32.totalorder %s18, 7
      %p84 = por %p82, %p83
      %p85 = scmp.ne.s32.totalorder %s77, %s80
      %p86 = scmp.eq.s32.totalorder %s18, 0
      %p87 = por %p85, %p86
      %p88 = scmp.ne.s32.totalorder %s77, %s80
      %p89 = scmp.eq.s32.totalorder %s23, 7
      %p90 = por %p88, %p89
      %p91 = scmp.ne.s32.totalorder %s80, %s81
      %p92 = scmp.eq.s32.totalorder %s23, 0
      %p93 = por %p91, %p92
      %p94 = scmp.ne.s32.totalorder %s80, %s81
      %p95 = scmp.eq.s32.totalorder %s24, 7
      %p96 = por %p94, %p95
      %p98 = scmp.ne.s32.totalorder %s81, %s97
      %p99 = scmp.eq.s32.totalorder %s24, 0
      %p100 = por %p98, %p99
      %s101 = ssub.s32 %s26, %s40
      %p102 = scmp.eq.s32.totalorder %s101, 0
      %s104 = sadd.s32 %s103, 1
      %s105 = scalar_select %p102, %s103, %s104
      %p108 = pneg %p102
      %p109 = scmp.eq.s32.totalorder %s18, 7
      %p110 = por %p108, %p109
      %p111 = scmp.ne.s32.totalorder %s103, %s106
      %p112 = scmp.eq.s32.totalorder %s18, 0
      %p113 = por %p111, %p112
      %p114 = scmp.ne.s32.totalorder %s103, %s106
      %p115 = scmp.eq.s32.totalorder %s23, 7
      %p116 = por %p114, %p115
      %p117 = scmp.ne.s32.totalorder %s106, %s107
      %p118 = scmp.eq.s32.totalorder %s23, 0
      %p119 = por %p117, %p118
      %p120 = scmp.ne.s32.totalorder %s106, %s107
      %p121 = scmp.eq.s32.totalorder %s24, 7
      %p122 = por %p120, %p121
      %p124 = scmp.ne.s32.totalorder %s107, %s123
      %p125 = scmp.eq.s32.totalorder %s24, 0
      %p126 = por %p124, %p125
      %s127 = ssub.s32 %s25, %s44
      %s128 = ssub.s32 %s26, %s40
      %s129 = sor.u32 %s127, %s128
      %p130 = scmp.eq.s32.totalorder %s129, 0
      %s132 = sadd.s32 %s131, 1
      %s133 = scalar_select %p130, %s131, %s132
      %p136 = pneg %p130
      %p137 = scmp.eq.s32.totalorder %s18, 7
      %p138 = por %p136, %p137
      %p139 = scmp.ne.s32.totalorder %s131, %s134
      %p140 = scmp.eq.s32.totalorder %s18, 0
      %p141 = por %p139, %p140
      %p142 = scmp.ne.s32.totalorder %s131, %s134
      %p143 = scmp.eq.s32.totalorder %s23, 7
      %p144 = por %p142, %p143
      %p145 = scmp.ne.s32.totalorder %s134, %s135
      %p146 = scmp.eq.s32.totalorder %s23, 0
      %p147 = por %p145, %p146
      %p148 = scmp.ne.s32.totalorder %s134, %s135
      %p149 = scmp.eq.s32.totalorder %s24, 7
      %p150 = por %p148, %p149
      %p152 = scmp.ne.s32.totalorder %s135, %s151
      %p153 = scmp.eq.s32.totalorder %s24, 0
      %p154 = por %p152, %p153
      %p155 = scmp.le.s32.totalorder 1, %s18
      %p156 = scmp.lt.s32.totalorder %s18, 9
      %p157 = pnand %p155, %p156
      %p158 = pneg %p157
      // Predicated region
      $region9: #{tpu_custom_call.1} parent=5 // pred_check
        _
      $region10: #{tpu_custom_call.1} parent=5 // pred_check_branch
        %160 = sbr.rel (%p157) target = $region12
      $region11: #{tpu_custom_call.1} parent=5 // pred_region
        %s161 = ssub.s32 %s18, 1
      $region12: #{tpu_custom_call.1} parent=5 // pred_fallthru
        _
      %p162 = scmp.lt.s32.totalorder %s18, 8
      // Predicated region
      $region13: #{tpu_custom_call.1} parent=5 // pred_check
        %p163 = pneg %p162
      $region14: #{tpu_custom_call.1} parent=5 // pred_check_branch
        %165 = sbr.rel (%p163) target = $region16
      $region15: #{tpu_custom_call.1} parent=5 // pred_region
        // Predicated region
        $region17: #{tpu_custom_call.1} parent=15 // pred_check
          %p166 = pneg %p59
        $region18: #{tpu_custom_call.1} parent=15 // pred_check_branch
          %168 = sbr.rel (%p166) target = $region20
        $region19: #{tpu_custom_call.1} parent=15 // pred_region
          %s169 = sand.u32 %s49, 1
          %s170 = scalar_lea.sflag [#allocation4], %s169
          %s171 = sand.u32 %s49, 1
          %s172 = smul.addr %s171, 128
          %s173 = scalar_lea.vmem [#allocation3], %s172
          %s174 = smul.u32 16, %s25
          %s175 = smul.u32 2, %s27
          %177 = vsyncadd %s170, 0
          %s178 = smul.addr %s174, 4
          %s179 = sadd.s32 %s175, %s178
          %s180 = smul.addr %s179, 4
          %s181 = scalar_lea.hbm %s0, %s180
          %s182 = sshll.u32 %s181, 4
          %s183 = int_to_ptr.hbm [resolvable:$true] %s182
          %s184 = sshll.u32 %s173, 4
          %s185 = int_to_ptr.vmem [resolvable:$true] %s184
          %190 = dma.hbm_to_vmem [thread:$0]  %s183, 2048, %s185, %s170, 256, 128, 8
        $region20: #{tpu_custom_call.1} parent=15 // pred_fallthru
          _
        // Predicated region
        $region21: #{tpu_custom_call.1} parent=15 // pred_check
          %p191 = pneg %p87
        $region22: #{tpu_custom_call.1} parent=15 // pred_check_branch
          %193 = sbr.rel (%p191) target = $region24
        $region23: #{tpu_custom_call.1} parent=15 // pred_region
          %s194 = sand.u32 %s18, 1
          %s195 = scalar_lea.sflag [#allocation7], %s194
          %s196 = sand.u32 %s77, 1
          %s197 = smul.addr %s196, 256
          %s198 = scalar_lea.vmem [#allocation6], %s197
          %s199 = smul.u32 32, %s26
          %s200 = smul.u32 2, %s27
          %202 = vsyncadd %s195, 0
          %s203 = smul.addr %s199, 4
          %s204 = sadd.s32 %s200, %s203
          %s205 = smul.addr %s204, 4
          %s206 = scalar_lea.hbm %s1, %s205
          %s207 = sshll.u32 %s206, 4
          %s208 = int_to_ptr.hbm [resolvable:$true] %s207
          %s209 = sshll.u32 %s198, 4
          %s210 = int_to_ptr.vmem [resolvable:$true] %s209
          %215 = dma.hbm_to_vmem [thread:$0]  %s208, 4096, %s210, %s195, 256, 128, 8
        $region24: #{tpu_custom_call.1} parent=15 // pred_fallthru
          _
        // Predicated region
        $region25: #{tpu_custom_call.1} parent=15 // pred_check
          %p216 = pneg %p113
        $region26: #{tpu_custom_call.1} parent=15 // pred_check_branch
          %218 = sbr.rel (%p216) target = $region28
        $region27: #{tpu_custom_call.1} parent=15 // pred_region
          %s219 = sand.u32 %s18, 1
          %s220 = scalar_lea.sflag [#allocation7], %s219
          %s221 = sand.u32 %s103, 1
          %s222 = smul.addr %s221, 2
          %s223 = scalar_lea.vmem [#allocation8], %s222
          %s224 = smul.u32 2, %s26
          %226 = vsyncadd %s220, 0
          %s227 = scalar_lea.hbm %s2, %s224
          %s229 = sshll.u32 %s227, 4
          %s230 = int_to_ptr.hbm [resolvable:$true] %s229
          %s231 = sshll.u32 %s223, 4
          %s232 = int_to_ptr.vmem [resolvable:$true] %s231
          %234 = dma.hbm_to_vmem [thread:$0]  %s230, 32, %s232, %s220
        $region28: #{tpu_custom_call.1} parent=15 // pred_fallthru
          _
      $region16: #{tpu_custom_call.1} parent=5 // pred_fallthru
        _
      %p235 = scmp.le.s32.totalorder 1, %s18
      %p236 = scmp.lt.s32.totalorder %s18, 9
      %p237 = pnand %p235, %p236
      %p238 = pneg %p237
      // Predicated region
      $region29: #{tpu_custom_call.1} parent=5 // pred_check
        _
      $region30: #{tpu_custom_call.1} parent=5 // pred_check_branch
        %240 = sbr.rel (%p237) target = $region32
      $region31: #{tpu_custom_call.1} parent=5 // pred_region
        %s241 = ssub.s32 %s18, 1
        %s242 = sand.u32 %s52, 1
        %s243 = scalar_lea.sflag [#allocation4], %s242
        %s244 = sand.u32 %s52, 1
        %s245 = smul.addr %s244, 128
        %s246 = scalar_lea.vmem [#allocation3], %s245
        // Predicated region
        $region33: #{tpu_custom_call.1} parent=31 // pred_check
          %p247 = pneg %p65
        $region34: #{tpu_custom_call.1} parent=31 // pred_check_branch
          %249 = sbr.rel (%p247) target = $region36
        $region35: #{tpu_custom_call.1} parent=31 // pred_region
          %251 = dma.done %s243, 2048
        $region36: #{tpu_custom_call.1} parent=31 // pred_fallthru
          _
        %s252 = sand.u32 %s23, 1
        %s253 = scalar_lea.sflag [#allocation7], %s252
        %s254 = sand.u32 %s80, 1
        %s255 = smul.addr %s254, 256
        %s256 = scalar_lea.vmem [#allocation6], %s255
        // Predicated region
        $region37: #{tpu_custom_call.1} parent=31 // pred_check
          %p257 = pneg %p93
        $region38: #{tpu_custom_call.1} parent=31 // pred_check_branch
          %259 = sbr.rel (%p257) target = $region40
        $region39: #{tpu_custom_call.1} parent=31 // pred_region
          %261 = dma.done %s253, 4096
        $region40: #{tpu_custom_call.1} parent=31 // pred_fallthru
          _
        %s262 = sand.u32 %s23, 1
        %s263 = scalar_lea.sflag [#allocation7], %s262
        %s264 = sand.u32 %s106, 1
        %s265 = smul.addr %s264, 2
        %s266 = scalar_lea.vmem [#allocation8], %s265
        // Predicated region
        $region41: #{tpu_custom_call.1} parent=31 // pred_check
          %p267 = pneg %p119
        $region42: #{tpu_custom_call.1} parent=31 // pred_check_branch
          %269 = sbr.rel (%p267) target = $region44
        $region43: #{tpu_custom_call.1} parent=31 // pred_region
          %271 = dma.done %s263, 32
        $region44: #{tpu_custom_call.1} parent=31 // pred_fallthru
          _
        %s272 = sand.u32 %s52, 1
        %s273 = scalar_lea.sflag [#allocation4], %s272
        %s274 = sand.u32 %s52, 1
        %s275 = smul.addr %s274, 128
        %s276 = scalar_lea.vmem [#allocation3], %s275
        %p277 = pneg %p65
        %p278 = pneg %p62
        %s279 = sand.u32 %s23, 1
        %s280 = scalar_lea.sflag [#allocation7], %s279
        %s281 = sand.u32 %s80, 1
        %s282 = smul.addr %s281, 256
        %s283 = scalar_lea.vmem [#allocation6], %s282
        %p284 = pneg %p93
        %p285 = pneg %p90
        %s286 = sand.u32 %s23, 1
        %s287 = scalar_lea.sflag [#allocation7], %s286
        %s288 = sand.u32 %s106, 1
        %s289 = smul.addr %s288, 2
        %s290 = scalar_lea.vmem [#allocation8], %s289
        %p291 = pneg %p119
        %p292 = pneg %p116
        %p293 = pneg %p147
        %p294 = pneg %p144
        %s295 = sand.u32 %s134, 1
        %s296 = scalar_lea.sflag [#allocation5], %s295
        %s297 = sand.u32 %s134, 1
        %s298 = smul.addr %s297, 256
        %s299 = scalar_lea.vmem [#allocation9], %s298
        %s300 = smul.u32 16, %s28
        %s301 = smul.u32 2, %s30
        %s302 = smul.u32 32, %s29
        %s303 = smul.u32 2, %s30
        %s304 = smul.u32 2, %s29
        %s305 = smul.u32 16, %s28
        %s306 = smul.u32 2, %s29
        %p307 = scmp.eq.s32.totalorder %s30, 0
        // Predicated region
        $region45: #{tpu_custom_call.1} parent=31 // pred_check
          %p308 = pneg %p307
        $region46: #{tpu_custom_call.1} parent=31 // pred_check_branch
          %310 = sbr.rel (%p308) target = $region48
        $region47: #{tpu_custom_call.1} parent=31 // pred_region
          %311 = vst [vmem:[#allocation2] sm:$0xff] 0.0
          %312 = vst [vmem:[#allocation2 + $0x8] sm:$0xff] 0.0
          %313 = vst [vmem:[#allocation2 + $0x10] sm:$0xff] 0.0
          %314 = vst [vmem:[#allocation2 + $0x18] sm:$0xff] 0.0
          %315 = vst [vmem:[#allocation2 + $0x20] sm:$0xff] 0.0
          %316 = vst [vmem:[#allocation2 + $0x28] sm:$0xff] 0.0
          %317 = vst [vmem:[#allocation2 + $0x30] sm:$0xff] 0.0
          %318 = vst [vmem:[#allocation2 + $0x38] sm:$0xff] 0.0
          %319 = vst [vmem:[#allocation2 + $0x40] sm:$0xff] 0.0
          %320 = vst [vmem:[#allocation2 + $0x48] sm:$0xff] 0.0
          %321 = vst [vmem:[#allocation2 + $0x50] sm:$0xff] 0.0
          %322 = vst [vmem:[#allocation2 + $0x58] sm:$0xff] 0.0
          %323 = vst [vmem:[#allocation2 + $0x60] sm:$0xff] 0.0
          %324 = vst [vmem:[#allocation2 + $0x68] sm:$0xff] 0.0
          %325 = vst [vmem:[#allocation2 + $0x70] sm:$0xff] 0.0
          %326 = vst [vmem:[#allocation2 + $0x78] sm:$0xff] 0.0
          %327 = vst [vmem:[#allocation2 + $0x80] sm:$0xff] 0.0
          %328 = vst [vmem:[#allocation2 + $0x88] sm:$0xff] 0.0
          %329 = vst [vmem:[#allocation2 + $0x90] sm:$0xff] 0.0
          %330 = vst [vmem:[#allocation2 + $0x98] sm:$0xff] 0.0
          %331 = vst [vmem:[#allocation2 + $0xa0] sm:$0xff] 0.0
          %332 = vst [vmem:[#allocation2 + $0xa8] sm:$0xff] 0.0
          %333 = vst [vmem:[#allocation2 + $0xb0] sm:$0xff] 0.0
          %334 = vst [vmem:[#allocation2 + $0xb8] sm:$0xff] 0.0
          %335 = vst [vmem:[#allocation2 + $0xc0] sm:$0xff] 0.0
          %336 = vst [vmem:[#allocation2 + $0xc8] sm:$0xff] 0.0
          %337 = vst [vmem:[#allocation2 + $0xd0] sm:$0xff] 0.0
          %338 = vst [vmem:[#allocation2 + $0xd8] sm:$0xff] 0.0
          %339 = vst [vmem:[#allocation2 + $0xe0] sm:$0xff] 0.0
          %340 = vst [vmem:[#allocation2 + $0xe8] sm:$0xff] 0.0
          %341 = vst [vmem:[#allocation2 + $0xf0] sm:$0xff] 0.0
          %342 = vst [vmem:[#allocation2 + $0xf8] sm:$0xff] 0.0
        $region48: #{tpu_custom_call.1} parent=31 // pred_fallthru
          _
        %v343 = vld [vmem:[#allocation2] sm:$0xff]
        %v344 = vld [vmem:[#allocation2 + $0x8] sm:$0xff]
        %v345 = vld [vmem:[#allocation2 + $0x10] sm:$0xff]
        %v346 = vld [vmem:[#allocation2 + $0x18] sm:$0xff]
        %v347 = vld [vmem:[#allocation2 + $0x20] sm:$0xff]
        %v348 = vld [vmem:[#allocation2 + $0x28] sm:$0xff]
        %v349 = vld [vmem:[#allocation2 + $0x30] sm:$0xff]
        %v350 = vld [vmem:[#allocation2 + $0x38] sm:$0xff]
        %v351 = vld [vmem:[#allocation2 + $0x40] sm:$0xff]
        %v352 = vld [vmem:[#allocation2 + $0x48] sm:$0xff]
        %v353 = vld [vmem:[#allocation2 + $0x50] sm:$0xff]
        %v354 = vld [vmem:[#allocation2 + $0x58] sm:$0xff]
        %v355 = vld [vmem:[#allocation2 + $0x60] sm:$0xff]
        %v356 = vld [vmem:[#allocation2 + $0x68] sm:$0xff]
        %v357 = vld [vmem:[#allocation2 + $0x70] sm:$0xff]
        %v358 = vld [vmem:[#allocation2 + $0x78] sm:$0xff]
        %v359 = vld [vmem:[#allocation2 + $0x80] sm:$0xff]
        %v360 = vld [vmem:[#allocation2 + $0x88] sm:$0xff]
        %v361 = vld [vmem:[#allocation2 + $0x90] sm:$0xff]
        %v362 = vld [vmem:[#allocation2 + $0x98] sm:$0xff]
        %v363 = vld [vmem:[#allocation2 + $0xa0] sm:$0xff]
        %v364 = vld [vmem:[#allocation2 + $0xa8] sm:$0xff]
        %v365 = vld [vmem:[#allocation2 + $0xb0] sm:$0xff]
        %v366 = vld [vmem:[#allocation2 + $0xb8] sm:$0xff]
        %v367 = vld [vmem:[#allocation2 + $0xc0] sm:$0xff]
        %v368 = vld [vmem:[#allocation2 + $0xc8] sm:$0xff]
        %v369 = vld [vmem:[#allocation2 + $0xd0] sm:$0xff]
        %v370 = vld [vmem:[#allocation2 + $0xd8] sm:$0xff]
        %v371 = vld [vmem:[#allocation2 + $0xe0] sm:$0xff]
        %v372 = vld [vmem:[#allocation2 + $0xe8] sm:$0xff]
        %v373 = vld [vmem:[#allocation2 + $0xf0] sm:$0xff]
        %v374 = vld [vmem:[#allocation2 + $0xf8] sm:$0xff]
        %v375 = vld [vmem:[%s246] sm:$0xff]
        %v376 = vld [vmem:[%s246 + $0x8] sm:$0xff]
        %v377 = vld [vmem:[%s246 + $0x10] sm:$0xff]
        %v378 = vld [vmem:[%s246 + $0x18] sm:$0xff]
        %v379 = vld [vmem:[%s246 + $0x20] sm:$0xff]
        %v380 = vld [vmem:[%s246 + $0x28] sm:$0xff]
        %v381 = vld [vmem:[%s246 + $0x30] sm:$0xff]
        %v382 = vld [vmem:[%s246 + $0x38] sm:$0xff]
        %v383 = vld [vmem:[%s246 + $0x40] sm:$0xff]
        %v384 = vld [vmem:[%s246 + $0x48] sm:$0xff]
        %v385 = vld [vmem:[%s246 + $0x50] sm:$0xff]
        %v386 = vld [vmem:[%s246 + $0x58] sm:$0xff]
        %v387 = vld [vmem:[%s246 + $0x60] sm:$0xff]
        %v388 = vld [vmem:[%s246 + $0x68] sm:$0xff]
        %v389 = vld [vmem:[%s246 + $0x70] sm:$0xff]
        %v390 = vld [vmem:[%s246 + $0x78] sm:$0xff]
        %v391 = vld [vmem:[%s256] sm:$0xff]
        %v392 = vld [vmem:[%s256 + $0x8] sm:$0xff]
        %v393 = vld [vmem:[%s256 + $0x10] sm:$0xff]
        %v394 = vld [vmem:[%s256 + $0x18] sm:$0xff]
        %v395 = vld [vmem:[%s256 + $0x20] sm:$0xff]
        %v396 = vld [vmem:[%s256 + $0x28] sm:$0xff]
        %v397 = vld [vmem:[%s256 + $0x30] sm:$0xff]
        %v398 = vld [vmem:[%s256 + $0x38] sm:$0xff]
        %v399 = vld [vmem:[%s256 + $0x40] sm:$0xff]
        %v400 = vld [vmem:[%s256 + $0x48] sm:$0xff]
        %v401 = vld [vmem:[%s256 + $0x50] sm:$0xff]
        %v402 = vld [vmem:[%s256 + $0x58] sm:$0xff]
        %v403 = vld [vmem:[%s256 + $0x60] sm:$0xff]
        %v404 = vld [vmem:[%s256 + $0x68] sm:$0xff]
        %v405 = vld [vmem:[%s256 + $0x70] sm:$0xff]
        %v406 = vld [vmem:[%s256 + $0x78] sm:$0xff]
        %v407 = vld [vmem:[%s256 + $0x80] sm:$0xff]
        %v408 = vld [vmem:[%s256 + $0x88] sm:$0xff]
        %v409 = vld [vmem:[%s256 + $0x90] sm:$0xff]
        %v410 = vld [vmem:[%s256 + $0x98] sm:$0xff]
        %v411 = vld [vmem:[%s256 + $0xa0] sm:$0xff]
        %v412 = vld [vmem:[%s256 + $0xa8] sm:$0xff]
        %v413 = vld [vmem:[%s256 + $0xb0] sm:$0xff]
        %v414 = vld [vmem:[%s256 + $0xb8] sm:$0xff]
        %v415 = vld [vmem:[%s256 + $0xc0] sm:$0xff]
        %v416 = vld [vmem:[%s256 + $0xc8] sm:$0xff]
        %v417 = vld [vmem:[%s256 + $0xd0] sm:$0xff]
        %v418 = vld [vmem:[%s256 + $0xd8] sm:$0xff]
        %v419 = vld [vmem:[%s256 + $0xe0] sm:$0xff]
        %v420 = vld [vmem:[%s256 + $0xe8] sm:$0xff]
        %v421 = vld [vmem:[%s256 + $0xf0] sm:$0xff]
        %v422 = vld [vmem:[%s256 + $0xf8] sm:$0xff]
        %v439 = vunpack.c.l.b16 %v375
        %v440 = vunpack.c.h.b16 %v375
        %v441 = vunpack.c.l.b16 %v376
        %v442 = vunpack.c.h.b16 %v376
        %v443 = vunpack.c.l.b16 %v377
        %v444 = vunpack.c.h.b16 %v377
        %v445 = vunpack.c.l.b16 %v378
        %v446 = vunpack.c.h.b16 %v378
        %v447 = vunpack.c.l.b16 %v379
        %v448 = vunpack.c.h.b16 %v379
        %v449 = vunpack.c.l.b16 %v380
        %v450 = vunpack.c.h.b16 %v380
        %v451 = vunpack.c.l.b16 %v381
        %v452 = vunpack.c.h.b16 %v381
        %v453 = vunpack.c.l.b16 %v382
        %v454 = vunpack.c.h.b16 %v382
        %v455 = vunpack.c.l.b16 %v383
        %v456 = vunpack.c.h.b16 %v383
        %v457 = vunpack.c.l.b16 %v384
        %v458 = vunpack.c.h.b16 %v384
        %v459 = vunpack.c.l.b16 %v385
        %v460 = vunpack.c.h.b16 %v385
        %v461 = vunpack.c.l.b16 %v386
        %v462 = vunpack.c.h.b16 %v386
        %v463 = vunpack.c.l.b16 %v387
        %v464 = vunpack.c.h.b16 %v387
        %v465 = vunpack.c.l.b16 %v388
        %v466 = vunpack.c.h.b16 %v388
        %v467 = vunpack.c.l.b16 %v389
        %v468 = vunpack.c.h.b16 %v389
        %v469 = vunpack.c.l.b16 %v390
        %v470 = vunpack.c.h.b16 %v390
        %v471 = vpack.c.b16 %v441, %v439
        %v472 = vpack.c.b16 %v442, %v440
        %v473 = vpack.c.b16 %v445, %v443
        %v474 = vpack.c.b16 %v446, %v444
        %v475 = vpack.c.b16 %v449, %v447
        %v476 = vpack.c.b16 %v450, %v448
        %v477 = vpack.c.b16 %v453, %v451
        %v478 = vpack.c.b16 %v454, %v452
        %v479 = vpack.c.b16 %v457, %v455
        %v480 = vpack.c.b16 %v458, %v456
        %v481 = vpack.c.b16 %v461, %v459
        %v482 = vpack.c.b16 %v462, %v460
        %v483 = vpack.c.b16 %v465, %v463
        %v484 = vpack.c.b16 %v466, %v464
        %v485 = vpack.c.b16 %v469, %v467
        %v486 = vpack.c.b16 %v470, %v468
        %v535 = vunpack.c.l.b16 %v391
        %v536 = vunpack.c.h.b16 %v391
        %v537 = vunpack.c.l.b16 %v392
        %v538 = vunpack.c.h.b16 %v392
        %v539 = vunpack.c.l.b16 %v393
        %v540 = vunpack.c.h.b16 %v393
        %v541 = vunpack.c.l.b16 %v394
        %v542 = vunpack.c.h.b16 %v394
        %v543 = vunpack.c.l.b16 %v395
        %v544 = vunpack.c.h.b16 %v395
        %v545 = vunpack.c.l.b16 %v396
        %v546 = vunpack.c.h.b16 %v396
        %v547 = vunpack.c.l.b16 %v397
        %v548 = vunpack.c.h.b16 %v397
        %v549 = vunpack.c.l.b16 %v398
        %v550 = vunpack.c.h.b16 %v398
        %v551 = vunpack.c.l.b16 %v399
        %v552 = vunpack.c.h.b16 %v399
        %v553 = vunpack.c.l.b16 %v400
        %v554 = vunpack.c.h.b16 %v400
        %v555 = vunpack.c.l.b16 %v401
        %v556 = vunpack.c.h.b16 %v401
        %v557 = vunpack.c.l.b16 %v402
        %v558 = vunpack.c.h.b16 %v402
        %v559 = vunpack.c.l.b16 %v403
        %v560 = vunpack.c.h.b16 %v403
        %v561 = vunpack.c.l.b16 %v404
        %v562 = vunpack.c.h.b16 %v404
        %v563 = vunpack.c.l.b16 %v405
        %v564 = vunpack.c.h.b16 %v405
        %v565 = vunpack.c.l.b16 %v406
        %v566 = vunpack.c.h.b16 %v406
        %v567 = vunpack.c.l.b16 %v407
        %v568 = vunpack.c.h.b16 %v407
        %v569 = vunpack.c.l.b16 %v408
        %v570 = vunpack.c.h.b16 %v408
        %v571 = vunpack.c.l.b16 %v409
        %v572 = vunpack.c.h.b16 %v409
        %v573 = vunpack.c.l.b16 %v410
        %v574 = vunpack.c.h.b16 %v410
        %v575 = vunpack.c.l.b16 %v411
        %v576 = vunpack.c.h.b16 %v411
        %v577 = vunpack.c.l.b16 %v412
        %v578 = vunpack.c.h.b16 %v412
        %v579 = vunpack.c.l.b16 %v413
        %v580 = vunpack.c.h.b16 %v413
        %v581 = vunpack.c.l.b16 %v414
        %v582 = vunpack.c.h.b16 %v414
        %v583 = vunpack.c.l.b16 %v415
        %v584 = vunpack.c.h.b16 %v415
        %v585 = vunpack.c.l.b16 %v416
        %v586 = vunpack.c.h.b16 %v416
        %v587 = vunpack.c.l.b16 %v417
        %v588 = vunpack.c.h.b16 %v417
        %v589 = vunpack.c.l.b16 %v418
        %v590 = vunpack.c.h.b16 %v418
        %v591 = vunpack.c.l.b16 %v419
        %v592 = vunpack.c.h.b16 %v419
        %v593 = vunpack.c.l.b16 %v420
        %v594 = vunpack.c.h.b16 %v420
        %v595 = vunpack.c.l.b16 %v421
        %v596 = vunpack.c.h.b16 %v421
        %v597 = vunpack.c.l.b16 %v422
        %v598 = vunpack.c.h.b16 %v422
        %v599 = vpack.c.b16 %v537, %v535
        %v600 = vpack.c.b16 %v538, %v536
        %v601 = vpack.c.b16 %v541, %v539
        %v602 = vpack.c.b16 %v542, %v540
        %v603 = vpack.c.b16 %v545, %v543
        %v604 = vpack.c.b16 %v546, %v544
        %v605 = vpack.c.b16 %v549, %v547
        %v606 = vpack.c.b16 %v550, %v548
        %v607 = vpack.c.b16 %v553, %v551
        %v608 = vpack.c.b16 %v554, %v552
        %v609 = vpack.c.b16 %v557, %v555
        %v610 = vpack.c.b16 %v558, %v556
        %v611 = vpack.c.b16 %v561, %v559
        %v612 = vpack.c.b16 %v562, %v560
        %v613 = vpack.c.b16 %v565, %v563
        %v614 = vpack.c.b16 %v566, %v564
        %v615 = vpack.c.b16 %v569, %v567
        %v616 = vpack.c.b16 %v570, %v568
        %v617 = vpack.c.b16 %v573, %v571
        %v618 = vpack.c.b16 %v574, %v572
        %v619 = vpack.c.b16 %v577, %v575
        %v620 = vpack.c.b16 %v578, %v576
        %v621 = vpack.c.b16 %v581, %v579
        %v622 = vpack.c.b16 %v582, %v580
        %v623 = vpack.c.b16 %v585, %v583
        %v624 = vpack.c.b16 %v586, %v584
        %v625 = vpack.c.b16 %v589, %v587
        %v626 = vpack.c.b16 %v590, %v588
        %v627 = vpack.c.b16 %v593, %v591
        %v628 = vpack.c.b16 %v594, %v592
        %v629 = vpack.c.b16 %v597, %v595
        %v630 = vpack.c.b16 %v598, %v596
        %663 = vmatpush.bf16.xpose.msra.mxu0 %v613
        %664 = vmatpush.bf16.xpose.msra.mxu0 %v611
        %665 = vmatpush.bf16.xpose.msra.mxu0 %v609
        %666 = vmatpush.bf16.xpose.msra.mxu0 %v607
        %667 = vmatpush.bf16.xpose.msra.mxu0 %v605
        %668 = vmatpush.bf16.xpose.msra.mxu0 %v603
        %669 = vmatpush.bf16.xpose.msra.mxu0 %v601
        %670 = vmatpush.bf16.xpose.msra.mxu0 %v599
        %671 = vmatmul.bf16.gmra.mxu0 %v471
        %v672 = vpop.f32.mrf.mxu0
        %v673 = vadd.f32 0.0, %v672
        %v674 = vpop.f32.mrf.mxu0
        %v675 = vadd.f32 0.0, %v674
        %676 = vmatmul.bf16.gmra.mxu0 %v473
        %v677 = vpop.f32.mrf.mxu0
        %v678 = vadd.f32 0.0, %v677
        %v679 = vpop.f32.mrf.mxu0
        %v680 = vadd.f32 0.0, %v679
        %681 = vmatmul.bf16.gmra.mxu0 %v475
        %v682 = vpop.f32.mrf.mxu0
        %v683 = vadd.f32 0.0, %v682
        %v684 = vpop.f32.mrf.mxu0
        %v685 = vadd.f32 0.0, %v684
        %686 = vmatmul.bf16.gmra.mxu0 %v477
        %v687 = vpop.f32.mrf.mxu0
        %v688 = vadd.f32 0.0, %v687
        %v689 = vpop.f32.mrf.mxu0
        %v690 = vadd.f32 0.0, %v689
        %691 = vmatmul.bf16.gmra.mxu0 %v479
        %v692 = vpop.f32.mrf.mxu0
        %v693 = vadd.f32 0.0, %v692
        %v694 = vpop.f32.mrf.mxu0
        %v695 = vadd.f32 0.0, %v694
        %696 = vmatmul.bf16.gmra.mxu0 %v481
        %v697 = vpop.f32.mrf.mxu0
        %v698 = vadd.f32 0.0, %v697
        %v699 = vpop.f32.mrf.mxu0
        %v700 = vadd.f32 0.0, %v699
        %701 = vmatmul.bf16.gmra.mxu0 %v483
        %v702 = vpop.f32.mrf.mxu0
        %v703 = vadd.f32 0.0, %v702
        %v704 = vpop.f32.mrf.mxu0
        %v705 = vadd.f32 0.0, %v704
        %706 = vmatmul.bf16.gmra.mxu0 %v485
        %v707 = vpop.f32.mrf.mxu0
        %v708 = vadd.f32 0.0, %v707
        %v709 = vpop.f32.mrf.mxu0
        %v710 = vadd.f32 0.0, %v709
        %711 = vdwg.mxu0
        %712 = vmatpush.bf16.xpose.msra.mxu0 %v614
        %713 = vmatpush.bf16.xpose.msra.mxu0 %v612
        %714 = vmatpush.bf16.xpose.msra.mxu0 %v610
        %715 = vmatpush.bf16.xpose.msra.mxu0 %v608
        %716 = vmatpush.bf16.xpose.msra.mxu0 %v606
        %717 = vmatpush.bf16.xpose.msra.mxu0 %v604
        %718 = vmatpush.bf16.xpose.msra.mxu0 %v602
        %719 = vmatpush.bf16.xpose.msra.mxu0 %v600
        %720 = vmatmul.bf16.gmra.mxu0 %v472
        %v721 = vpop.f32.mrf.mxu0
        %v722 = vadd.f32 %v673, %v721
        %v723 = vpop.f32.mrf.mxu0
        %v724 = vadd.f32 %v675, %v723
        %725 = vmatmul.bf16.gmra.mxu0 %v474
        %v726 = vpop.f32.mrf.mxu0
        %v727 = vadd.f32 %v678, %v726
        %v728 = vpop.f32.mrf.mxu0
        %v729 = vadd.f32 %v680, %v728
        %730 = vmatmul.bf16.gmra.mxu0 %v476
        %v731 = vpop.f32.mrf.mxu0
        %v732 = vadd.f32 %v683, %v731
        %v733 = vpop.f32.mrf.mxu0
        %v734 = vadd.f32 %v685, %v733
        %735 = vmatmul.bf16.gmra.mxu0 %v478
        %v736 = vpop.f32.mrf.mxu0
        %v737 = vadd.f32 %v688, %v736
        %v738 = vpop.f32.mrf.mxu0
        %v739 = vadd.f32 %v690, %v738
        %740 = vmatmul.bf16.gmra.mxu0 %v480
        %v741 = vpop.f32.mrf.mxu0
        %v742 = vadd.f32 %v693, %v741
        %v743 = vpop.f32.mrf.mxu0
        %v744 = vadd.f32 %v695, %v743
        %745 = vmatmul.bf16.gmra.mxu0 %v482
        %v746 = vpop.f32.mrf.mxu0
        %v747 = vadd.f32 %v698, %v746
        %v748 = vpop.f32.mrf.mxu0
        %v749 = vadd.f32 %v700, %v748
        %750 = vmatmul.bf16.gmra.mxu0 %v484
        %v751 = vpop.f32.mrf.mxu0
        %v752 = vadd.f32 %v703, %v751
        %v753 = vpop.f32.mrf.mxu0
        %v754 = vadd.f32 %v705, %v753
        %755 = vmatmul.bf16.gmra.mxu0 %v486
        %v756 = vpop.f32.mrf.mxu0
        %v757 = vadd.f32 %v708, %v756
        %v758 = vpop.f32.mrf.mxu0
        %v759 = vadd.f32 %v710, %v758
        %760 = vdwg.mxu0
        %761 = vmatpush.bf16.xpose.msra.mxu0 %v629
        %762 = vmatpush.bf16.xpose.msra.mxu0 %v627
        %763 = vmatpush.bf16.xpose.msra.mxu0 %v625
        %764 = vmatpush.bf16.xpose.msra.mxu0 %v623
        %765 = vmatpush.bf16.xpose.msra.mxu0 %v621
        %766 = vmatpush.bf16.xpose.msra.mxu0 %v619
        %767 = vmatpush.bf16.xpose.msra.mxu0 %v617
        %768 = vmatpush.bf16.xpose.msra.mxu0 %v615
        %769 = vmatmul.bf16.gmra.mxu0 %v471
        %v770 = vpop.f32.mrf.mxu0
        %v771 = vadd.f32 0.0, %v770
        %v772 = vpop.f32.mrf.mxu0
        %v773 = vadd.f32 0.0, %v772
        %774 = vmatmul.bf16.gmra.mxu0 %v473
        %v775 = vpop.f32.mrf.mxu0
        %v776 = vadd.f32 0.0, %v775
        %v777 = vpop.f32.mrf.mxu0
        %v778 = vadd.f32 0.0, %v777
        %779 = vmatmul.bf16.gmra.mxu0 %v475
        %v780 = vpop.f32.mrf.mxu0
        %v781 = vadd.f32 0.0, %v780
        %v782 = vpop.f32.mrf.mxu0
        %v783 = vadd.f32 0.0, %v782
        %784 = vmatmul.bf16.gmra.mxu0 %v477
        %v785 = vpop.f32.mrf.mxu0
        %v786 = vadd.f32 0.0, %v785
        %v787 = vpop.f32.mrf.mxu0
        %v788 = vadd.f32 0.0, %v787
        %789 = vmatmul.bf16.gmra.mxu0 %v479
        %v790 = vpop.f32.mrf.mxu0
        %v791 = vadd.f32 0.0, %v790
        %v792 = vpop.f32.mrf.mxu0
        %v793 = vadd.f32 0.0, %v792
        %794 = vmatmul.bf16.gmra.mxu0 %v481
        %v795 = vpop.f32.mrf.mxu0
        %v796 = vadd.f32 0.0, %v795
        %v797 = vpop.f32.mrf.mxu0
        %v798 = vadd.f32 0.0, %v797
        %799 = vmatmul.bf16.gmra.mxu0 %v483
        %v800 = vpop.f32.mrf.mxu0
        %v801 = vadd.f32 0.0, %v800
        %v802 = vpop.f32.mrf.mxu0
        %v803 = vadd.f32 0.0, %v802
        %804 = vmatmul.bf16.gmra.mxu0 %v485
        %v805 = vpop.f32.mrf.mxu0
        %v806 = vadd.f32 0.0, %v805
        %v807 = vpop.f32.mrf.mxu0
        %v808 = vadd.f32 0.0, %v807
        %809 = vdwg.mxu0
        %810 = vmatpush.bf16.xpose.msra.mxu0 %v630
        %811 = vmatpush.bf16.xpose.msra.mxu0 %v628
        %812 = vmatpush.bf16.xpose.msra.mxu0 %v626
        %813 = vmatpush.bf16.xpose.msra.mxu0 %v624
        %814 = vmatpush.bf16.xpose.msra.mxu0 %v622
        %815 = vmatpush.bf16.xpose.msra.mxu0 %v620
        %816 = vmatpush.bf16.xpose.msra.mxu0 %v618
        %817 = vmatpush.bf16.xpose.msra.mxu0 %v616
        %818 = vmatmul.bf16.gmra.mxu0 %v472
        %v819 = vpop.f32.mrf.mxu0
        %v820 = vadd.f32 %v771, %v819
        %v821 = vpop.f32.mrf.mxu0
        %v822 = vadd.f32 %v773, %v821
        %823 = vmatmul.bf16.gmra.mxu0 %v474
        %v824 = vpop.f32.mrf.mxu0
        %v825 = vadd.f32 %v776, %v824
        %v826 = vpop.f32.mrf.mxu0
        %v827 = vadd.f32 %v778, %v826
        %828 = vmatmul.bf16.gmra.mxu0 %v476
        %v829 = vpop.f32.mrf.mxu0
        %v830 = vadd.f32 %v781, %v829
        %v831 = vpop.f32.mrf.mxu0
        %v832 = vadd.f32 %v783, %v831
        %833 = vmatmul.bf16.gmra.mxu0 %v478
        %v834 = vpop.f32.mrf.mxu0
        %v835 = vadd.f32 %v786, %v834
        %v836 = vpop.f32.mrf.mxu0
        %v837 = vadd.f32 %v788, %v836
        %838 = vmatmul.bf16.gmra.mxu0 %v480
        %v839 = vpop.f32.mrf.mxu0
        %v840 = vadd.f32 %v791, %v839
        %v841 = vpop.f32.mrf.mxu0
        %v842 = vadd.f32 %v793, %v841
        %843 = vmatmul.bf16.gmra.mxu0 %v482
        %v844 = vpop.f32.mrf.mxu0
        %v845 = vadd.f32 %v796, %v844
        %v846 = vpop.f32.mrf.mxu0
        %v847 = vadd.f32 %v798, %v846
        %848 = vmatmul.bf16.gmra.mxu0 %v484
        %v849 = vpop.f32.mrf.mxu0
        %v850 = vadd.f32 %v801, %v849
        %v851 = vpop.f32.mrf.mxu0
        %v852 = vadd.f32 %v803, %v851
        %853 = vmatmul.bf16.gmra.mxu0 %v486
        %v854 = vpop.f32.mrf.mxu0
        %v855 = vadd.f32 %v806, %v854
        %v856 = vpop.f32.mrf.mxu0
        %v857 = vadd.f32 %v808, %v856
        %858 = vdwg.mxu0
        %v859 = vadd.f32 %v343, %v722
        %v860 = vadd.f32 %v344, %v820
        %v861 = vadd.f32 %v345, %v724
        %v862 = vadd.f32 %v346, %v822
        %v863 = vadd.f32 %v347, %v727
        %v864 = vadd.f32 %v348, %v825
        %v865 = vadd.f32 %v349, %v729
        %v866 = vadd.f32 %v350, %v827
        %v867 = vadd.f32 %v351, %v732
        %v868 = vadd.f32 %v352, %v830
        %v869 = vadd.f32 %v353, %v734
        %v870 = vadd.f32 %v354, %v832
        %v871 = vadd.f32 %v355, %v737
        %v872 = vadd.f32 %v356, %v835
        %v873 = vadd.f32 %v357, %v739
        %v874 = vadd.f32 %v358, %v837
        %v875 = vadd.f32 %v359, %v742
        %v876 = vadd.f32 %v360, %v840
        %v877 = vadd.f32 %v361, %v744
        %v878 = vadd.f32 %v362, %v842
        %v879 = vadd.f32 %v363, %v747
        %v880 = vadd.f32 %v364, %v845
        %v881 = vadd.f32 %v365, %v749
        %v882 = vadd.f32 %v366, %v847
        %v883 = vadd.f32 %v367, %v752
        %v884 = vadd.f32 %v368, %v850
        %v885 = vadd.f32 %v369, %v754
        %v886 = vadd.f32 %v370, %v852
        %v887 = vadd.f32 %v371, %v757
        %v888 = vadd.f32 %v372, %v855
        %v889 = vadd.f32 %v373, %v759
        %v890 = vadd.f32 %v374, %v857
        %891 = vst [vmem:[#allocation2] sm:$0xff] %v859
        %892 = vst [vmem:[#allocation2 + $0x8] sm:$0xff] %v860
        %893 = vst [vmem:[#allocation2 + $0x10] sm:$0xff] %v861
        %894 = vst [vmem:[#allocation2 + $0x18] sm:$0xff] %v862
        %895 = vst [vmem:[#allocation2 + $0x20] sm:$0xff] %v863
        %896 = vst [vmem:[#allocation2 + $0x28] sm:$0xff] %v864
        %897 = vst [vmem:[#allocation2 + $0x30] sm:$0xff] %v865
        %898 = vst [vmem:[#allocation2 + $0x38] sm:$0xff] %v866
        %899 = vst [vmem:[#allocation2 + $0x40] sm:$0xff] %v867
        %900 = vst [vmem:[#allocation2 + $0x48] sm:$0xff] %v868
        %901 = vst [vmem:[#allocation2 + $0x50] sm:$0xff] %v869
        %902 = vst [vmem:[#allocation2 + $0x58] sm:$0xff] %v870
        %903 = vst [vmem:[#allocation2 + $0x60] sm:$0xff] %v871
        %904 = vst [vmem:[#allocation2 + $0x68] sm:$0xff] %v872
        %905 = vst [vmem:[#allocation2 + $0x70] sm:$0xff] %v873
        %906 = vst [vmem:[#allocation2 + $0x78] sm:$0xff] %v874
        %907 = vst [vmem:[#allocation2 + $0x80] sm:$0xff] %v875
        %908 = vst [vmem:[#allocation2 + $0x88] sm:$0xff] %v876
        %909 = vst [vmem:[#allocation2 + $0x90] sm:$0xff] %v877
        %910 = vst [vmem:[#allocation2 + $0x98] sm:$0xff] %v878
        %911 = vst [vmem:[#allocation2 + $0xa0] sm:$0xff] %v879
        %912 = vst [vmem:[#allocation2 + $0xa8] sm:$0xff] %v880
        %913 = vst [vmem:[#allocation2 + $0xb0] sm:$0xff] %v881
        %914 = vst [vmem:[#allocation2 + $0xb8] sm:$0xff] %v882
        %915 = vst [vmem:[#allocation2 + $0xc0] sm:$0xff] %v883
        %916 = vst [vmem:[#allocation2 + $0xc8] sm:$0xff] %v884
        %917 = vst [vmem:[#allocation2 + $0xd0] sm:$0xff] %v885
        %918 = vst [vmem:[#allocation2 + $0xd8] sm:$0xff] %v886
        %919 = vst [vmem:[#allocation2 + $0xe0] sm:$0xff] %v887
        %920 = vst [vmem:[#allocation2 + $0xe8] sm:$0xff] %v888
        %921 = vst [vmem:[#allocation2 + $0xf0] sm:$0xff] %v889
        %922 = vst [vmem:[#allocation2 + $0xf8] sm:$0xff] %v890
        %p923 = scmp.eq.s32.totalorder %s30, 1
        // Predicated region
        $region49: #{tpu_custom_call.1} parent=31 // pred_check
          %p924 = pneg %p923
        $region50: #{tpu_custom_call.1} parent=31 // pred_check_branch
          %926 = sbr.rel (%p924) target = $region52
        $region51: #{tpu_custom_call.1} parent=31 // pred_region
          %v927 = vld [vmem:[#allocation2] sm:$0xff]
          %v928 = vld [vmem:[#allocation2 + $0x8] sm:$0xff]
          %v929 = vld [vmem:[#allocation2 + $0x10] sm:$0xff]
          %v930 = vld [vmem:[#allocation2 + $0x18] sm:$0xff]
          %v931 = vld [vmem:[#allocation2 + $0x20] sm:$0xff]
          %v932 = vld [vmem:[#allocation2 + $0x28] sm:$0xff]
          %v933 = vld [vmem:[#allocation2 + $0x30] sm:$0xff]
          %v934 = vld [vmem:[#allocation2 + $0x38] sm:$0xff]
          %v935 = vld [vmem:[#allocation2 + $0x40] sm:$0xff]
          %v936 = vld [vmem:[#allocation2 + $0x48] sm:$0xff]
          %v937 = vld [vmem:[#allocation2 + $0x50] sm:$0xff]
          %v938 = vld [vmem:[#allocation2 + $0x58] sm:$0xff]
          %v939 = vld [vmem:[#allocation2 + $0x60] sm:$0xff]
          %v940 = vld [vmem:[#allocation2 + $0x68] sm:$0xff]
          %v941 = vld [vmem:[#allocation2 + $0x70] sm:$0xff]
          %v942 = vld [vmem:[#allocation2 + $0x78] sm:$0xff]
          %v943 = vld [vmem:[#allocation2 + $0x80] sm:$0xff]
          %v944 = vld [vmem:[#allocation2 + $0x88] sm:$0xff]
          %v945 = vld [vmem:[#allocation2 + $0x90] sm:$0xff]
          %v946 = vld [vmem:[#allocation2 + $0x98] sm:$0xff]
          %v947 = vld [vmem:[#allocation2 + $0xa0] sm:$0xff]
          %v948 = vld [vmem:[#allocation2 + $0xa8] sm:$0xff]
          %v949 = vld [vmem:[#allocation2 + $0xb0] sm:$0xff]
          %v950 = vld [vmem:[#allocation2 + $0xb8] sm:$0xff]
          %v951 = vld [vmem:[#allocation2 + $0xc0] sm:$0xff]
          %v952 = vld [vmem:[#allocation2 + $0xc8] sm:$0xff]
          %v953 = vld [vmem:[#allocation2 + $0xd0] sm:$0xff]
          %v954 = vld [vmem:[#allocation2 + $0xd8] sm:$0xff]
          %v955 = vld [vmem:[#allocation2 + $0xe0] sm:$0xff]
          %v956 = vld [vmem:[#allocation2 + $0xe8] sm:$0xff]
          %v957 = vld [vmem:[#allocation2 + $0xf0] sm:$0xff]
          %v958 = vld [vmem:[#allocation2 + $0xf8] sm:$0xff]
          %v959 = vld [vmem:[%s266] sm:$0x3]
          %v961 = vperm.slane %v959, 0
          %v962 = vperm.slane %v959, 1
          %v965 = vadd.f32 %v927, %v961
          %v966 = vadd.f32 %v928, %v962
          %v967 = vadd.f32 %v929, %v961
          %v968 = vadd.f32 %v930, %v962
          %v969 = vadd.f32 %v931, %v961
          %v970 = vadd.f32 %v932, %v962
          %v971 = vadd.f32 %v933, %v961
          %v972 = vadd.f32 %v934, %v962
          %v973 = vadd.f32 %v935, %v961
          %v974 = vadd.f32 %v936, %v962
          %v975 = vadd.f32 %v937, %v961
          %v976 = vadd.f32 %v938, %v962
          %v977 = vadd.f32 %v939, %v961
          %v978 = vadd.f32 %v940, %v962
          %v979 = vadd.f32 %v941, %v961
          %v980 = vadd.f32 %v942, %v962
          %v981 = vadd.f32 %v943, %v961
          %v982 = vadd.f32 %v944, %v962
          %v983 = vadd.f32 %v945, %v961
          %v984 = vadd.f32 %v946, %v962
          %v985 = vadd.f32 %v947, %v961
          %v986 = vadd.f32 %v948, %v962
          %v987 = vadd.f32 %v949, %v961
          %v988 = vadd.f32 %v950, %v962
          %v989 = vadd.f32 %v951, %v961
          %v990 = vadd.f32 %v952, %v962
          %v991 = vadd.f32 %v953, %v961
          %v992 = vadd.f32 %v954, %v962
          %v993 = vadd.f32 %v955, %v961
          %v994 = vadd.f32 %v956, %v962
          %v995 = vadd.f32 %v957, %v961
          %v996 = vadd.f32 %v958, %v962
          %997 = vst [vmem:[%s299] sm:$0xff] %v965
          %998 = vst [vmem:[%s299 + $0x8] sm:$0xff] %v966
          %999 = vst [vmem:[%s299 + $0x10] sm:$0xff] %v967
          %1000 = vst [vmem:[%s299 + $0x18] sm:$0xff] %v968
          %1001 = vst [vmem:[%s299 + $0x20] sm:$0xff] %v969
          %1002 = vst [vmem:[%s299 + $0x28] sm:$0xff] %v970
          %1003 = vst [vmem:[%s299 + $0x30] sm:$0xff] %v971
          %1004 = vst [vmem:[%s299 + $0x38] sm:$0xff] %v972
          %1005 = vst [vmem:[%s299 + $0x40] sm:$0xff] %v973
          %1006 = vst [vmem:[%s299 + $0x48] sm:$0xff] %v974
          %1007 = vst [vmem:[%s299 + $0x50] sm:$0xff] %v975
          %1008 = vst [vmem:[%s299 + $0x58] sm:$0xff] %v976
          %1009 = vst [vmem:[%s299 + $0x60] sm:$0xff] %v977
          %1010 = vst [vmem:[%s299 + $0x68] sm:$0xff] %v978
          %1011 = vst [vmem:[%s299 + $0x70] sm:$0xff] %v979
          %1012 = vst [vmem:[%s299 + $0x78] sm:$0xff] %v980
          %1013 = vst [vmem:[%s299 + $0x80] sm:$0xff] %v981
          %1014 = vst [vmem:[%s299 + $0x88] sm:$0xff] %v982
          %1015 = vst [vmem:[%s299 + $0x90] sm:$0xff] %v983
          %1016 = vst [vmem:[%s299 + $0x98] sm:$0xff] %v984
          %1017 = vst [vmem:[%s299 + $0xa0] sm:$0xff] %v985
          %1018 = vst [vmem:[%s299 + $0xa8] sm:$0xff] %v986
          %1019 = vst [vmem:[%s299 + $0xb0] sm:$0xff] %v987
          %1020 = vst [vmem:[%s299 + $0xb8] sm:$0xff] %v988
          %1021 = vst [vmem:[%s299 + $0xc0] sm:$0xff] %v989
          %1022 = vst [vmem:[%s299 + $0xc8] sm:$0xff] %v990
          %1023 = vst [vmem:[%s299 + $0xd0] sm:$0xff] %v991
          %1024 = vst [vmem:[%s299 + $0xd8] sm:$0xff] %v992
          %1025 = vst [vmem:[%s299 + $0xe0] sm:$0xff] %v993
          %1026 = vst [vmem:[%s299 + $0xe8] sm:$0xff] %v994
          %1027 = vst [vmem:[%s299 + $0xf0] sm:$0xff] %v995
          %1028 = vst [vmem:[%s299 + $0xf8] sm:$0xff] %v996
        $region52: #{tpu_custom_call.1} parent=31 // pred_fallthru
          _
        %s1029 = sand.u32 %s134, 1
        %s1030 = scalar_lea.sflag [#allocation5], %s1029
        %s1031 = sand.u32 %s134, 1
        %s1032 = smul.addr %s1031, 256
        %s1033 = scalar_lea.vmem [#allocation9], %s1032
        // Predicated region
        $region53: #{tpu_custom_call.1} parent=31 // pred_check
          %p1034 = pneg %p144
        $region54: #{tpu_custom_call.1} parent=31 // pred_check_branch
          %1036 = sbr.rel (%p1034) target = $region56
        $region55: #{tpu_custom_call.1} parent=31 // pred_region
          %s1037 = smul.u32 16, %s28
          %s1038 = smul.u32 2, %s29
          %1040 = vsyncadd %s1030, 0
          %s1041 = smul.addr %s1037, 8
          %s1042 = sadd.s32 %s1038, %s1041
          %s1043 = smul.addr %s1042, 8
          %s1044 = scalar_lea.hbm %s3, %s1043
          %s1045 = sshll.u32 %s1033, 4
          %s1046 = int_to_ptr.vmem [resolvable:$true] %s1045
          %s1047 = sshll.u32 %s1044, 4
          %s1048 = int_to_ptr.hbm [resolvable:$true] %s1047
          %1053 = dma.vmem_to_hbm [thread:$0]  %s1046, 4096, %s1048, %s1030, 256, 1024, 16
        $region56: #{tpu_custom_call.1} parent=31 // pred_fallthru
          _
      $region32: #{tpu_custom_call.1} parent=5 // pred_fallthru
        _
      %p1054 = scmp.le.s32.totalorder 2, %s18
      // Predicated region
      $region57: #{tpu_custom_call.1} parent=5 // pred_check
        %p1055 = pneg %p1054
      $region58: #{tpu_custom_call.1} parent=5 // pred_check_branch
        %1057 = sbr.rel (%p1055) target = $region60
      $region59: #{tpu_custom_call.1} parent=5 // pred_region
        %s1058 = ssub.s32 %s18, 2
        // Predicated region
        $region61: #{tpu_custom_call.1} parent=59 // pred_check
          %p1059 = pneg %p150
        $region62: #{tpu_custom_call.1} parent=59 // pred_check_branch
          %1061 = sbr.rel (%p1059) target = $region64
        $region63: #{tpu_custom_call.1} parent=59 // pred_region
          %s1062 = sand.u32 %s135, 1
          %s1063 = scalar_lea.sflag [#allocation5], %s1062
          %s1064 = sand.u32 %s135, 1
          %s1065 = smul.addr %s1064, 256
          %s1066 = scalar_lea.vmem [#allocation9], %s1065
          %1068 = dma.done %s1063, 4096
        $region64: #{tpu_custom_call.1} parent=59 // pred_fallthru
          _
      $region60: #{tpu_custom_call.1} parent=5 // pred_fallthru
        _
    $region6: #{tpu_custom_call.1} parent=1 // loop_footer
      %s22 = sadd.s32 1, %s18
    $region7: #{tpu_custom_call.1} parent=1 // loop_footer_branch
      %17 = sbr.rel target = $region3
    $region8: #{tpu_custom_call.1} parent=1 // loop_exit
      _
    %1069 = vsyncpa [#allocation4], 1
    %s1070 = scalar_lea.sflag [#allocation4], 1
    %1071 = vsyncpa %s1070, 1
    %1072 = vsyncpa [#allocation7], 1
    %s1073 = scalar_lea.sflag [#allocation7], 1
    %1074 = vsyncpa %s1073, 1
    %1075 = vsyncpa [#allocation5], 1
    %s1076 = scalar_lea.sflag [#allocation5], 1
    %1077 = vsyncpa %s1076, 1

</llo_original>
